<compile_context>
chip_gen: v6e
topology: v6e:2x2x1
jax: 0.10.0
libtpu: 0.0.40
codegen_flags: <defaults>
</compile_context>

<pallas_src>
import functools

import jax
import jax.numpy as jnp
from jax.experimental import pallas as pl
from jax.experimental.pallas import tpu as pltpu

_LANES = 128
_SUBLANES = 8
_BLOCK_BYTES = 4 * 1024 * 1024  # per-buffer input-block budget (double-buffered)


def _clustering_loss_kernel(x_ref, o_ref, sum_ref, sumsq_ref, *, n_total):
    k = pl.program_id(1)  # batch (reduction) axis

    @pl.when(k == 0)
    def _():
        sum_ref[...] = jnp.zeros_like(sum_ref)
        sumsq_ref[...] = jnp.zeros_like(sumsq_ref)

    x = x_ref[...]                                               # (tn, tf) f32
    sum_ref[...] += jnp.sum(x, axis=0, keepdims=True)            # per-feature sum
    sumsq_ref[...] += jnp.sum(jnp.square(x), axis=0, keepdims=True)

    @pl.when(k == pl.num_programs(1) - 1)
    def _():
        s = sum_ref[...]
        # sum_b (x - mean)^2 = sum_b x^2 - (sum_b x)^2 / N   (per feature)
        o_ref[...] = sumsq_ref[...] - s * s * jnp.float32(1.0 / n_total)


def _pick_tile(total, unit, limit):
    """Largest multiple of `unit` dividing `total`, capped at `limit`.
    Falls back to the full extent when `total` is not a multiple of `unit`
    (full-extent blocks are always legal w.r.t. the (8,128) constraint)."""
    if total % unit != 0:
        return total
    best = unit
    t = unit
    cap = min(total, max(limit, unit))
    while t <= cap:
        if total % t == 0:
            best = t
        t += unit
    return best


def clustering_loss(data, *, max_feature_tile=2048, max_batch_tile=None,
                    vmem_limit_bytes=32 * 1024 * 1024):
    """data: (batch, feature) -> scalar f32 loss (mean=None path of the module)."""
    # TODO(synk): the explicit `mean` argument of the PyTorch forward is not
    # handled by this kernel (default mean=None path only, matching usage).
    data = jnp.asarray(data, jnp.float32)
    n, f = data.shape

    # Feature tile: as wide as allowed (lane-dense, contiguous DMA rows).
    tf = _pick_tile(f, _LANES, max_feature_tile)
    # Batch tile: fill the per-buffer VMEM budget given the feature tile.
    batch_cap = max(_SUBLANES, _BLOCK_BYTES // max(tf * 4, 1))
    if max_batch_tile is not None:
        batch_cap = min(batch_cap, max(max_batch_tile, _SUBLANES))
    tn = _pick_tile(n, _SUBLANES, batch_cap)

    num_fb = f // tf
    num_nb = n // tn
    grid = (num_fb, num_nb)  # (feature blocks [parallel], batch blocks [reduction])

    kernel = functools.partial(_clustering_loss_kernel, n_total=n)

    per_feat = pl.pallas_call(
        kernel,
        out_shape=jax.ShapeDtypeStruct((num_fb, tf), jnp.float32),
        grid_spec=pltpu.PrefetchScalarGridSpec(
            num_scalar_prefetch=0,
            grid=grid,
            in_specs=[pl.BlockSpec((tn, tf), lambda i, k: (k, i))],
            out_specs=pl.BlockSpec((1, tf), lambda i, k: (i, 0)),
            scratch_shapes=[pltpu.VMEM((1, tf), jnp.float32),
                            pltpu.VMEM((1, tf), jnp.float32)],
        ),
        compiler_params=pltpu.CompilerParams(
            dimension_semantics=("parallel", "arbitrary"),
            vmem_limit_bytes=vmem_limit_bytes,
        ),
        cost_estimate=pl.CostEstimate(
            flops=3 * n * f,
            transcendentals=0,
            bytes_accessed=n * f * 4 + f * 4,
        ),
    )(data)

    return jnp.sum(per_feat) / jnp.float32(n * f)


def clustering_loss_ref(data):
    mean = jnp.mean(data, axis=0, keepdims=True)
    diff = data - mean
    return jnp.mean(diff * diff)


if __name__ == "__main__":
    key = jax.random.PRNGKey(0)

    # Primary small test, matching the module's (batch, feature) layout.
    batch, feature = 8, 256
    data = jax.random.normal(key, (batch, feature), dtype=jnp.float32)
    loss = jax.block_until_ready(clustering_loss(data))
    ref = clustering_loss_ref(data)
    assert jnp.allclose(loss, ref, rtol=1e-5, atol=1e-6), (loss, ref)

    # Exercise the multi-block (tiled batch + feature) path.
    k2, k3 = jax.random.split(key)
    data2 = jax.random.normal(k2, (32, 512), dtype=jnp.float32)
    loss2 = jax.block_until_ready(
        clustering_loss(data2, max_feature_tile=128, max_batch_tile=8))
    ref2 = clustering_loss_ref(data2)
    assert jnp.allclose(loss2, ref2, rtol=1e-5, atol=1e-6), (loss2, ref2)

    # Non-aligned shape (full-extent single block fallback).
    data3 = jax.random.normal(k3, (6, 40), dtype=jnp.float32)
    loss3 = jax.block_until_ready(clustering_loss(data3))
    ref3 = clustering_loss_ref(data3)
    assert jnp.allclose(loss3, ref3, rtol=1e-5, atol=1e-6), (loss3, ref3)

    print("KERNEL_OK")
</pallas_src>

<mosaic_0001>
module attributes {stable_mosaic.version = 11 : i64} {
  func.func @_clustering_loss_kernel(%arg0: i32, %arg1: i32, %arg2: memref<8x256xf32, #tpu.memory_space<vmem>>, %arg3: memref<1x256xf32, #tpu.memory_space<vmem>>, %arg4: memref<1x256xf32, #tpu.memory_space<vmem>>, %arg5: memref<1x256xf32, #tpu.memory_space<vmem>>) attributes {dimension_semantics = [#tpu.dimension_semantics<parallel>, #tpu.dimension_semantics<arbitrary>], iteration_bounds = array<i64: 1, 1>, scalar_prefetch = 0 : i64, scratch_operands = 2 : i64, tpu.core_type = #tpu.core_type<tc>, window_params = [{transform_indices = @transform_0, window_bounds = array<i64: 8, 256>}, {transform_indices = @transform_1, window_bounds = array<i64: 1, 256>}]} {
    %c0_i32 = arith.constant 0 : i32
    %0 = arith.cmpi eq, %arg1, %c0_i32 : i32
    %1 = arith.extui %0 : i1 to i32
    %c0_i32_0 = arith.constant 0 : i32
    %2 = arith.cmpi ne, %1, %c0_i32_0 : i32
    scf.if %2 {
      %cst_13 = arith.constant 0.000000e+00 : f32
      %18 = vector.broadcast %cst_13 : f32 to vector<1x256xf32>
      %c0_14 = arith.constant 0 : index
      %c0_15 = arith.constant 0 : index
      %19 = vector.load %arg4[%c0_14, %c0_15] : memref<1x256xf32, #tpu.memory_space<vmem>>, vector<1x256xf32>
      tpu.vector_store %arg4[%c0_14, %c0_15], %18 {strides = array<i32>} : memref<1x256xf32, #tpu.memory_space<vmem>>, vector<1x256xf32>,
      %cst_16 = arith.constant 0.000000e+00 : f32
      %20 = vector.broadcast %cst_16 : f32 to vector<1x256xf32>
      %c0_17 = arith.constant 0 : index
      %c0_18 = arith.constant 0 : index
      %21 = vector.load %arg5[%c0_17, %c0_18] : memref<1x256xf32, #tpu.memory_space<vmem>>, vector<1x256xf32>
      tpu.vector_store %arg5[%c0_17, %c0_18], %20 {strides = array<i32>} : memref<1x256xf32, #tpu.memory_space<vmem>>, vector<1x256xf32>,
    } else {
    }
    %c0 = arith.constant 0 : index
    %c0_1 = arith.constant 0 : index
    %3 = vector.load %arg2[%c0, %c0_1] : memref<8x256xf32, #tpu.memory_space<vmem>>, vector<8x256xf32>
    %c0_2 = arith.constant 0 : index
    %c0_3 = arith.constant 0 : index
    %4 = vector.load %arg4[%c0_2, %c0_3] : memref<1x256xf32, #tpu.memory_space<vmem>>, vector<1x256xf32>
    %cst = arith.constant dense<0.000000e+00> : vector<256xf32>
    %5 = vector.multi_reduction <add>, %3, %cst [0] : vector<8x256xf32> to vector<256xf32>
    %6 = vector.shape_cast %5 : vector<256xf32> to vector<1x256xf32>
    %7 = arith.addf %4, %6 : vector<1x256xf32>
    %c0_4 = arith.constant 0 : index
    %c0_5 = arith.constant 0 : index
    %8 = vector.load %arg4[%c0_4, %c0_5] : memref<1x256xf32, #tpu.memory_space<vmem>>, vector<1x256xf32>
    tpu.vector_store %arg4[%c0_4, %c0_5], %7 {strides = array<i32>} : memref<1x256xf32, #tpu.memory_space<vmem>>, vector<1x256xf32>,
    %c0_6 = arith.constant 0 : index
    %c0_7 = arith.constant 0 : index
    %9 = vector.load %arg5[%c0_6, %c0_7] : memref<1x256xf32, #tpu.memory_space<vmem>>, vector<1x256xf32>
    %10 = arith.mulf %3, %3 : vector<8x256xf32>
    %cst_8 = arith.constant dense<0.000000e+00> : vector<256xf32>
    %11 = vector.multi_reduction <add>, %10, %cst_8 [0] : vector<8x256xf32> to vector<256xf32>
    %12 = vector.shape_cast %11 : vector<256xf32> to vector<1x256xf32>
    %13 = arith.addf %9, %12 : vector<1x256xf32>
    %c0_9 = arith.constant 0 : index
    %c0_10 = arith.constant 0 : index
    %14 = vector.load %arg5[%c0_9, %c0_10] : memref<1x256xf32, #tpu.memory_space<vmem>>, vector<1x256xf32>
    tpu.vector_store %arg5[%c0_9, %c0_10], %13 {strides = array<i32>} : memref<1x256xf32, #tpu.memory_space<vmem>>, vector<1x256xf32>,
    %c0_i32_11 = arith.constant 0 : i32
    %15 = arith.cmpi eq, %arg1, %c0_i32_11 : i32
    %16 = arith.extui %15 : i1 to i32
    %c0_i32_12 = arith.constant 0 : i32
    %17 = arith.cmpi ne, %16, %c0_i32_12 : i32
    scf.if %17 {
      %c0_13 = arith.constant 0 : index
      %c0_14 = arith.constant 0 : index
      %18 = vector.load %arg4[%c0_13, %c0_14] : memref<1x256xf32, #tpu.memory_space<vmem>>, vector<1x256xf32>
      %c0_15 = arith.constant 0 : index
      %c0_16 = arith.constant 0 : index
      %19 = vector.load %arg5[%c0_15, %c0_16] : memref<1x256xf32, #tpu.memory_space<vmem>>, vector<1x256xf32>
      %20 = arith.mulf %18, %18 : vector<1x256xf32>
      %cst_17 = arith.constant 1.250000e-01 : f32
      %21 = vector.broadcast %cst_17 : f32 to vector<1x256xf32>
      %22 = arith.mulf %20, %21 : vector<1x256xf32>
      %23 = arith.subf %19, %22 : vector<1x256xf32>
      %c0_18 = arith.constant 0 : index
      %c0_19 = arith.constant 0 : index
      %24 = vector.load %arg3[%c0_18, %c0_19] : memref<1x256xf32, #tpu.memory_space<vmem>>, vector<1x256xf32>
      tpu.vector_store %arg3[%c0_18, %c0_19], %23 {strides = array<i32>} : memref<1x256xf32, #tpu.memory_space<vmem>>, vector<1x256xf32>,
    } else {
    }
    return
  }
  func.func @transform_0(%arg0: i32, %arg1: i32) -> (i32, i32) {
    %c0_i32 = arith.constant 0 : i32
    return %arg1, %arg0 : i32, i32
  }
  func.func @transform_1(%arg0: i32, %arg1: i32) -> (i32, i32) {
    %c0_i32 = arith.constant 0 : i32
    %c0_i32_0 = arith.constant 0 : i32
    return %arg0, %c0_i32 : i32, i32
  }
}

</mosaic_0001>

<llo_original>
// kernel: tpu_custom_call.1
$region0: #{tpu_custom_call.1}
  #allocation0 [shape = 'u32[]', space=smem, size = 0x4, offset = 0x4, fixed_abs, tag = 'smem constant byte address 0x4 - core index']
  #allocation1 [shape = 'u32[144,128]{1,0:T(1,128)}', space=vmem, size = 0x12000, scoped, tag = 'internal scratch']
  #allocation2 [shape = 'f32[1,256]{1,0:T(1,128)}', space=vmem, size = 0x400, scoped, tag = 'scratch operand']
  #allocation3 [shape = 'f32[1,256]{1,0:T(1,128)}', space=vmem, size = 0x400, scoped, tag = 'scratch operand']
  %s0 = inlined_call_operand.hbm [shape: f32[8,256], index: 0, kind: input, shape index: {}]
  %s1 = inlined_call_operand.hbm [shape: f32[1,256], index: 1, kind: output, shape index: {}]
  %s2 = sld [smem:[#allocation0]]
  $region26: #{tpu_custom_call.1} parent=0
    _
  %s4 = ssub.s32 1, %s2
  %s5 = scalar_select 0, %s4, %s2
  $region1: #{tpu_custom_call.1} parent=0
    #allocation4 [shape = 'u8[8192]{0}', space=vmem, size = 0x2000, scoped, tag = 'input window, operand 0, single buffered']
    #allocation5 [shape = 's32[1]{0}', space=sflag, size = 0x4, scoped, tag = 'scoped memory for tpu_custom_call.1']
    #allocation6 [shape = 's32[1]{0}', space=sflag, size = 0x4, scoped, tag = 'scoped memory for tpu_custom_call.1']
    #allocation7 [shape = 'u8[1024]{0}', space=vmem, size = 0x400, scoped, tag = 'output window, operand 0, single buffered']
    %6 = vsyncpa [#allocation5], 0
    %7 = vsyncpa [#allocation6], 0
    // Predicated region
    $region2: #{tpu_custom_call.1} parent=1 // pred_check
      _
    $region3: #{tpu_custom_call.1} parent=1 // pred_check_branch
      %9 = sbr.rel (0) target = $region5
    $region4: #{tpu_custom_call.1} parent=1 // pred_region
      %s11 = ssub.s32 256, 256
      %12 = vsyncadd [#allocation5], %s11
      %s14 = sshll.u32 [#allocation4], 4
      %s15 = int_to_ptr.vmem [resolvable:$true] %s14
      %17 = dma.hbm_to_vmem [thread:$0]  %s0, 256, %s15, [#allocation5]
    $region5: #{tpu_custom_call.1} parent=1 // pred_fallthru
      _
    // Predicated region
    $region6: #{tpu_custom_call.1} parent=1 // pred_check
      _
    $region7: #{tpu_custom_call.1} parent=1 // pred_check_branch
      %19 = sbr.rel (0) target = $region9
    $region8: #{tpu_custom_call.1} parent=1 // pred_region
      %20 = dma.done [#allocation5], 256
    $region9: #{tpu_custom_call.1} parent=1 // pred_fallthru
      _
    %p21 = scmp.eq.s32.totalorder 0, 0
    // Predicated region
    $region10: #{tpu_custom_call.1} parent=1 // pred_check
      %p22 = pneg %p21
    $region11: #{tpu_custom_call.1} parent=1 // pred_check_branch
      %24 = sbr.rel (%p22) target = $region13
    $region12: #{tpu_custom_call.1} parent=1 // pred_region
      %v25 = vlaneseq
      %vm26 = vcmp.ge.s32.totalorder %v25, 0
      %vm27 = vcmp.lt.s32.totalorder %v25, 256
      %vm28 = vmand %vm26, %vm27
      %29 = vst.msk [vmem:[#allocation2] sm:$0x3] %vm28, 0.0
      %30 = vst.msk [vmem:[#allocation3] sm:$0x3] %vm28, 0.0
    $region13: #{tpu_custom_call.1} parent=1 // pred_fallthru
      _
    %v31 = vld [vmem:[#allocation4] sm:$0xff]
    %v32 = vld [vmem:[#allocation4 + $0x8] sm:$0xff]
    %v33 = vld [vmem:[#allocation2] sm:$0x3]
    %v34 = vrot.slane %v31, 4
    %v35 = vadd.f32 %v31, %v34
    %v36 = vrot.slane %v35, 2
    %v37 = vadd.f32 %v35, %v36
    %v38 = vrot.slane %v37, 1
    %v39 = vadd.f32 %v37, %v38
    %v40 = vrot.slane %v32, 4
    %v41 = vadd.f32 %v32, %v40
    %v42 = vrot.slane %v41, 2
    %v43 = vadd.f32 %v41, %v42
    %v44 = vrot.slane %v43, 1
    %v45 = vadd.f32 %v43, %v44
    %v48 = vcombine.low %v39, %v45
    %v50 = vunpack.c.l.s4 1966171168
    %v51 = vunpack.c.0.s8 %v50
    %v52 = vlaneseq
    %v53 = vshrl.u32 %v52, 7
    %v54 = vsub.s32 %v51, %v53
    %v55 = vrot.slane %v48, %v54
    %v57 = vunpack.c.l.s4 1966171168
    %v58 = vunpack.c.0.s8 %v57
    %v59 = vlaneseq
    %v60 = vshrl.u32 %v59, 7
    %v61 = vsub.s32 %v58, %v60
    %v62 = vrot.slane %v55, %v61
    %v64 = vadd.f32 %v33, %v62
    %v65 = vlaneseq
    %vm66 = vcmp.ge.s32.totalorder %v65, 0
    %vm67 = vcmp.lt.s32.totalorder %v65, 256
    %vm68 = vmand %vm66, %vm67
    %69 = vst.msk [vmem:[#allocation2] sm:$0x3] %vm68, %v64
    %v70 = vld [vmem:[#allocation3] sm:$0x3]
    %v71 = vmul.f32 %v31, %v31
    %v72 = vmul.f32 %v32, %v32
    %v73 = vrot.slane %v71, 4
    %v74 = vadd.f32 %v71, %v73
    %v75 = vrot.slane %v74, 2
    %v76 = vadd.f32 %v74, %v75
    %v77 = vrot.slane %v76, 1
    %v78 = vadd.f32 %v76, %v77
    %v79 = vrot.slane %v72, 4
    %v80 = vadd.f32 %v72, %v79
    %v81 = vrot.slane %v80, 2
    %v82 = vadd.f32 %v80, %v81
    %v83 = vrot.slane %v82, 1
    %v84 = vadd.f32 %v82, %v83
    %v87 = vcombine.low %v78, %v84
    %v89 = vunpack.c.l.s4 1966171168
    %v90 = vunpack.c.0.s8 %v89
    %v91 = vlaneseq
    %v92 = vshrl.u32 %v91, 7
    %v93 = vsub.s32 %v90, %v92
    %v94 = vrot.slane %v87, %v93
    %v96 = vunpack.c.l.s4 1966171168
    %v97 = vunpack.c.0.s8 %v96
    %v98 = vlaneseq
    %v99 = vshrl.u32 %v98, 7
    %v100 = vsub.s32 %v97, %v99
    %v101 = vrot.slane %v94, %v100
    %v103 = vadd.f32 %v70, %v101
    %104 = vst.msk [vmem:[#allocation3] sm:$0x3] %vm68, %v103
    // Predicated region
    $region14: #{tpu_custom_call.1} parent=1 // pred_check
      %p105 = pneg %p21
    $region15: #{tpu_custom_call.1} parent=1 // pred_check_branch
      %107 = sbr.rel (%p105) target = $region17
    $region16: #{tpu_custom_call.1} parent=1 // pred_region
      %v108 = vld [vmem:[#allocation2] sm:$0x3]
      %v109 = vld [vmem:[#allocation3] sm:$0x3]
      %v110 = vmul.f32 %v108, %v108
      %v111 = vmul.f32 %v110, 0.125
      %v112 = vsub.f32 %v109, %v111
      %113 = vst.msk [vmem:[#allocation7] sm:$0x3] %vm68, %v112
    $region17: #{tpu_custom_call.1} parent=1 // pred_fallthru
      _
    // Predicated region
    $region18: #{tpu_custom_call.1} parent=1 // pred_check
      _
    $region19: #{tpu_custom_call.1} parent=1 // pred_check_branch
      %115 = sbr.rel (0) target = $region21
    $region20: #{tpu_custom_call.1} parent=1 // pred_region
      %s117 = ssub.s32 32, 32
      %118 = vsyncadd [#allocation6], %s117
      %s120 = sshll.u32 [#allocation7], 4
      %s121 = int_to_ptr.vmem [resolvable:$true] %s120
      %123 = dma.vmem_to_hbm [thread:$0]  %s121, 32, %s1, [#allocation6]
    $region21: #{tpu_custom_call.1} parent=1 // pred_fallthru
      _
    // Predicated region
    $region22: #{tpu_custom_call.1} parent=1 // pred_check
      _
    $region23: #{tpu_custom_call.1} parent=1 // pred_check_branch
      %125 = sbr.rel (0) target = $region25
    $region24: #{tpu_custom_call.1} parent=1 // pred_region
      %126 = dma.done [#allocation6], 32
    $region25: #{tpu_custom_call.1} parent=1 // pred_fallthru
      _
    %127 = vsyncpa [#allocation5], 1
    %128 = vsyncpa [#allocation6], 1

</llo_original>
